<compile_context>
chip_gen: v5e
topology: v5e:2x2
jax: 0.10.0
libtpu: 0.0.40
codegen_flags: <defaults>
</compile_context>

<pallas_src>
import functools

import jax
import jax.numpy as jnp
from jax.experimental import pallas as pl
from jax.experimental.pallas import tpu as pltpu


def _patch_gemm_bias_relu_kernel(a_ref, w_ref, b_ref, o_ref, *, precision):
    # a_ref: (K, tm)   patch columns (lane-dense along the patch axis)
    # w_ref: (Cout, K) resident weight
    # b_ref: (Cout, 1) bias (f32)
    # o_ref: (Cout, tm) lane-dense output tile
    acc = jnp.dot(w_ref[...], a_ref[...],
                  preferred_element_type=jnp.float32, precision=precision)
    acc = acc + b_ref[...]
    o_ref[...] = jnp.maximum(acc, 0.0).astype(o_ref.dtype)


def _round_down_to_128(v):
    return max(128, (int(v) // 128) * 128)


def _pick_tm(m_pad, n, k, cout, a_bytes, o_bytes, tile_budget_bytes,
             target_tile_bytes):
    """Lane tile: multiple of 128 dividing m_pad, sized so that
    (a) double-buffered A+out tiles fit in tile_budget_bytes,
    (b) each step moves ~target_tile_bytes of A (amortise ~0.35us/step overhead),
    (c) the grid exposes >=2 (ideally >=4) blocks for v7x's two TensorCores."""
    q = m_pad // 128
    per_col = 2 * (k * a_bytes + cout * o_bytes)            # dbl-buffered bytes/column
    tm_vmem = _round_down_to_128(tile_budget_bytes // per_col)
    tm_want = _round_down_to_128(-(-target_tile_bytes // (k * a_bytes)))
    tm_par = m_pad
    for target_blocks, floor in ((4, 1024), (2, 256)):
        min_m_tiles = -(-target_blocks // n)
        cap = (m_pad // min_m_tiles) // 128 * 128
        if cap >= min(floor, m_pad):
            tm_par = max(128, cap)
            break
    tm_upper = max(128, min(tm_vmem, tm_want, tm_par, m_pad))
    d = tm_upper // 128
    while q % d:                                            # largest divisor of q <= d
        d -= 1
    return d * 128


def downsampling_conv_block(x, weight, bias, stride=2, *,
                            compute_dtype=None, target_tile_bytes=2 << 20):
    """Forward of DownsamplingConvBlock (normalization='none'): Conv3d + ReLU.

    x: (N, Cin, D, H, W); weight: (Cout, Cin, s, s, s); bias: (Cout,).
    compute_dtype: dtype of the A/W operands fed to the MXU (jnp.bfloat16 halves
    HBM read traffic). Accumulation, bias and ReLU stay f32; output keeps x.dtype.
    """
    N, Cin, D, H, W = x.shape
    Cout = weight.shape[0]
    s = int(stride)
    assert weight.shape == (Cout, Cin, s, s, s)
    assert D % s == 0 and H % s == 0 and W % s == 0
    Do, Ho, Wo = D // s, H // s, W // s
    # K need not be a multiple of 8 (e.g. Cin=1, s=3 -> K=27); legal via the
    # full-dim BlockSpec exemption, just sublane-padded on the MXU.
    K = Cin * s * s * s
    M = Do * Ho * Wo                       # patches (= output voxels) per sample

    if compute_dtype is None:
        compute_dtype = x.dtype
    compute_dtype = jnp.dtype(compute_dtype)
    out_dtype = x.dtype
    a_bytes = compute_dtype.itemsize
    o_bytes = jnp.dtype(out_dtype).itemsize

    # --- patchify: A^T of shape (N, K, M). K ordered (Cin, kd, kh, kw) to match
    # weight.reshape(Cout, K); M ordered (Do, Ho, Wo) so the output reshapes
    # directly to NCDHW. allow_input_fusion below lets XLA fold this transpose
    # (and the dtype cast) into the pallas input DMA where possible.
    xp = x.reshape(N, Cin, Do, s, Ho, s, Wo, s)
    at = jnp.transpose(xp, (0, 1, 3, 5, 7, 2, 4, 6)).reshape(N, K, M)
    at = at.astype(compute_dtype)
    w = weight.reshape(Cout, K).astype(compute_dtype)
    b = bias.astype(jnp.float32).reshape(Cout, 1)

    # --- generation-aware VMEM budget (v7x: 64 MiB/TC; v5e/v6e: 128 MiB).
    try:
        vmem_cap = int(getattr(pltpu.get_tpu_info(), "vmem_capacity_bytes",
                               64 << 20))
    except Exception:
        vmem_cap = 64 << 20                                  # conservative fallback
    scoped_cap = min((vmem_cap * 5) // 8, 96 << 20)          # ~40 MiB v7x, ~80 MiB v5e/v6e
    tile_budget = max(8 << 20, scoped_cap - (6 << 20))       # headroom for W/b + scratch

    # --- pad M only to the next multiple of 128; tm divides the padded M.
    M_pad = pl.cdiv(M, 128) * 128
    tm = _pick_tm(M_pad, N, K, Cout, a_bytes, o_bytes, tile_budget,
                  target_tile_bytes)
    if M_pad != M:
        # Padded columns flow through bias+ReLU and hold junk; they are removed by
        # the out[:, :, :M] slice below and must never be consumed directly.
        at = jnp.pad(at, ((0, 0), (0, 0), (0, M_pad - M)))

    grid = (N, M_pad // tm)

    step_bytes = tm * (K * a_bytes + Cout * o_bytes)
    vmem_limit = int(min(scoped_cap, max(16 << 20, 2 * step_bytes + (4 << 20))))

    flops = 2 * N * M_pad * K * Cout
    # Worst-case traffic (patchify transpose NOT fused): x read + `at` write
    # upstream, plus the kernel's own A read, W/b read and output write.
    bytes_accessed = (N * K * M * x.dtype.itemsize            # x read (patchify)
                      + N * K * M_pad * a_bytes               # at write (patchify)
                      + N * K * M_pad * a_bytes               # A read (kernel)
                      + K * Cout * a_bytes + Cout * 4         # W + bias
                      + N * Cout * M_pad * o_bytes)           # out write
    cost = pl.CostEstimate(flops=flops, transcendentals=0,
                           bytes_accessed=bytes_accessed)

    kernel = functools.partial(
        _patch_gemm_bias_relu_kernel,
        precision=(jax.lax.Precision.HIGHEST
                   if compute_dtype == jnp.float32 else None))

    out = pl.pallas_call(
        kernel,
        out_shape=jax.ShapeDtypeStruct((N, Cout, M_pad), out_dtype),
        grid_spec=pltpu.PrefetchScalarGridSpec(
            num_scalar_prefetch=0,
            grid=grid,
            in_specs=[
                pl.BlockSpec((None, K, tm), lambda n, i: (n, 0, i)),
                pl.BlockSpec((Cout, K), lambda n, i: (0, 0)),
                pl.BlockSpec((Cout, 1), lambda n, i: (0, 0)),
            ],
            out_specs=pl.BlockSpec((None, Cout, tm), lambda n, i: (n, 0, i)),
        ),
        compiler_params=pltpu.CompilerParams(
            dimension_semantics=("parallel", "parallel"),
            vmem_limit_bytes=vmem_limit,
            allow_input_fusion=[True, False, False],
        ),
        cost_estimate=cost,
    )(at, w, b)

    if M_pad != M:
        out = out[:, :, :M]
    # (N, Cout, Do*Ho*Wo) -> NCDHW with a reshape only (no transpose).
    return out.reshape(N, Cout, Do, Ho, Wo)


def _reference(x, weight, bias, stride=2):
    y = jax.lax.conv_general_dilated(
        x, weight,
        window_strides=(stride,) * 3,
        padding="VALID",
        dimension_numbers=("NCDHW", "OIDHW", "NCDHW"),
        precision=jax.lax.Precision.HIGHEST,
    )
    y = y + bias.reshape(1, -1, 1, 1, 1)
    return jnp.maximum(y, 0.0)


if __name__ == "__main__":
    # Small shapes consistent with the module: n_filters_in=4, n_filters_out=8, stride=2.
    N, Cin, Cout, D, H, W, s = 2, 4, 8, 16, 16, 16, 2

    key = jax.random.PRNGKey(0)
    kx, kw, kb = jax.random.split(key, 3)
    x = jax.random.normal(kx, (N, Cin, D, H, W), dtype=jnp.float32)
    fan_in = Cin * s * s * s
    bound = 1.0 / (fan_in ** 0.5)
    weight = jax.random.uniform(kw, (Cout, Cin, s, s, s), jnp.float32, -bound, bound)
    bias = jax.random.uniform(kb, (Cout,), jnp.float32, -bound, bound)

    ref = _reference(x, weight, bias, stride=s)

    # f32 path: faithful to the PyTorch module's numerics.
    out = jax.block_until_ready(downsampling_conv_block(x, weight, bias, stride=s))
    assert out.shape == (N, Cout, D // s, H // s, W // s)
    assert jnp.allclose(out, ref, atol=1e-5, rtol=1e-5)

    # bf16 A/W path (memory-bound op => ~2x less HBM read traffic); accumulation
    # stays f32 on the MXU, so only a relaxed tolerance vs the f32 reference applies.
    out_bf16 = jax.block_until_ready(
        downsampling_conv_block(x, weight, bias, stride=s,
                                compute_dtype=jnp.bfloat16))
    assert jnp.allclose(out_bf16, ref, atol=3e-2, rtol=3e-2)

    print("KERNEL_OK")
</pallas_src>

<mosaic_0001>
module attributes {stable_mosaic.version = 11 : i64} {
  func.func @_patch_gemm_bias_relu_kernel(%arg0: i32, %arg1: i32, %arg2: memref<1x32x512xf32, #tpu.memory_space<vmem>>, %arg3: memref<8x32xf32, #tpu.memory_space<vmem>>, %arg4: memref<8x1xf32, #tpu.memory_space<vmem>>, %arg5: memref<1x8x512xf32, #tpu.memory_space<vmem>>) attributes {dimension_semantics = [#tpu.dimension_semantics<parallel>, #tpu.dimension_semantics<parallel>], iteration_bounds = array<i64: 2, 1>, scalar_prefetch = 0 : i64, scratch_operands = 0 : i64, tpu.core_type = #tpu.core_type<tc>, window_params = [{transform_indices = @transform_0, window_bounds = array<i64: 1, 32, 512>}, {pipeline_mode = #tpu.pipeline_mode<synchronous>, transform_indices = @transform_1, window_bounds = array<i64: 8, 32>}, {pipeline_mode = #tpu.pipeline_mode<synchronous>, transform_indices = @transform_2, window_bounds = array<i64: 8, 1>}, {transform_indices = @transform_3, window_bounds = array<i64: 1, 8, 512>}]} {
    %c0 = arith.constant 0 : index
    %c0_0 = arith.constant 0 : index
    %0 = vector.load %arg3[%c0, %c0_0] : memref<8x32xf32, #tpu.memory_space<vmem>>, vector<8x32xf32>
    %c0_1 = arith.constant 0 : index
    %c0_2 = arith.constant 0 : index
    %c0_3 = arith.constant 0 : index
    %1 = vector.load %arg2[%c0_1, %c0_2, %c0_3] : memref<1x32x512xf32, #tpu.memory_space<vmem>>, vector<1x32x512xf32>
    %2 = vector.shape_cast %1 : vector<1x32x512xf32> to vector<32x512xf32>
    %cst = arith.constant dense<0.000000e+00> : vector<8x512xf32>
    %3 = tpu.matmul %0, %2, %cst {dimension_numbers = #tpu.dot_dimension_numbers<[1], [0], [0], [1], [0, 0, 1, 1], [], []>, precision = #tpu.contract_precision<fp32>} : vector<8x32xf32>, vector<32x512xf32>, vector<8x512xf32> -> vector<8x512xf32>
    %c0_4 = arith.constant 0 : index
    %c0_5 = arith.constant 0 : index
    %4 = vector.load %arg4[%c0_4, %c0_5] : memref<8x1xf32, #tpu.memory_space<vmem>>, vector<8x1xf32>
    %5 = vector.broadcast %4 : vector<8x1xf32> to vector<8x512xf32>
    %6 = arith.addf %3, %5 : vector<8x512xf32>
    %cst_6 = arith.constant 0.000000e+00 : f32
    %7 = vector.broadcast %cst_6 : f32 to vector<8x512xf32>
    %8 = arith.maximumf %6, %7 : vector<8x512xf32>
    %c0_7 = arith.constant 0 : index
    %c0_8 = arith.constant 0 : index
    %c0_9 = arith.constant 0 : index
    %9 = vector.load %arg5[%c0_7, %c0_8, %c0_9] : memref<1x8x512xf32, #tpu.memory_space<vmem>>, vector<1x8x512xf32>
    %10 = vector.shape_cast %9 : vector<1x8x512xf32> to vector<8x512xf32>
    %11 = vector.shape_cast %8 : vector<8x512xf32> to vector<1x8x512xf32>
    tpu.vector_store %arg5[%c0_7, %c0_8, %c0_9], %11 {strides = array<i32>} : memref<1x8x512xf32, #tpu.memory_space<vmem>>, vector<1x8x512xf32>,
    return
  }
  func.func @transform_0(%arg0: i32, %arg1: i32) -> (i32, i32, i32) {
    %c0_i32 = arith.constant 0 : i32
    %c0_i32_0 = arith.constant 0 : i32
    return %arg0, %c0_i32, %arg1 : i32, i32, i32
  }
  func.func @transform_1(%arg0: i32, %arg1: i32) -> (i32, i32) {
    %c0_i32 = arith.constant 0 : i32
    %c0_i32_0 = arith.constant 0 : i32
    %c0_i32_1 = arith.constant 0 : i32
    return %c0_i32, %c0_i32_0 : i32, i32
  }
  func.func @transform_2(%arg0: i32, %arg1: i32) -> (i32, i32) {
    %c0_i32 = arith.constant 0 : i32
    %c0_i32_0 = arith.constant 0 : i32
    %c0_i32_1 = arith.constant 0 : i32
    return %c0_i32, %c0_i32_0 : i32, i32
  }
  func.func @transform_3(%arg0: i32, %arg1: i32) -> (i32, i32, i32) {
    %c0_i32 = arith.constant 0 : i32
    %c0_i32_0 = arith.constant 0 : i32
    return %arg0, %c0_i32, %arg1 : i32, i32, i32
  }
}

</mosaic_0001>

<llo_original>
// kernel: tpu_custom_call.1
$region0: #{tpu_custom_call.1}
  #allocation0 [shape = 'u32[]', space=smem, size = 0x4, offset = 0x4, fixed_abs, tag = 'smem constant byte address 0x4 - core index']
  #allocation1 [shape = 'u32[72,128]{1,0:T(1,128)}', space=vmem, size = 0x9000, scoped, tag = 'internal scratch']
  %s0 = inlined_call_operand.hbm [shape: f32[2,32,512], index: 0, kind: input, shape index: {}]
  %s1 = inlined_call_operand.vmem [shape: f32[8,32], index: 1, kind: input, shape index: {}]
  %s2 = inlined_call_operand.vmem [shape: f32[8,1], index: 2, kind: input, shape index: {}]
  %s3 = inlined_call_operand.hbm [shape: f32[2,8,512], index: 3, kind: output, shape index: {}]
  %s4 = sld [smem:[#allocation0]]
  $region49: #{tpu_custom_call.1} parent=0
    _
  %s6 = ssub.s32 1, %s4
  %s7 = scalar_select 0, %s6, %s4
  $region1: #{tpu_custom_call.1} parent=0
    #allocation2 [shape = 'u8[131072]{0}', space=vmem, size = 0x20000, scoped, tag = 'input window, operand 0']
    #allocation3 [shape = 's32[2]{0}', space=sflag, size = 0x8, scoped, tag = 'scoped memory for tpu_custom_call.1']
    #allocation4 [shape = 's32[2]{0}', space=sflag, size = 0x8, scoped, tag = 'scoped memory for tpu_custom_call.1']
    #allocation5 [shape = 'u8[32768]{0}', space=vmem, size = 0x8000, scoped, tag = 'output window, operand 0']
    %8 = vsyncpa [#allocation3], 0
    %s9 = scalar_lea.sflag [#allocation3], 1
    %10 = vsyncpa %s9, 0
    %11 = vsyncpa [#allocation4], 0
    %s12 = scalar_lea.sflag [#allocation4], 1
    %13 = vsyncpa %s12, 0
    loop: start=0, step=1, limit=4
    $region2: #{tpu_custom_call.1} parent=1 // loop_pre_header
      _
    $region3: #{tpu_custom_call.1} parent=1 // loop_header
      %s15 = sphi 0, %s19
      %p16 = scmp.ge.s32.totalorder %s15, 4
      %s22 = sphi 0, %s34
      %s23 = sphi 0, %s30
      %s24 = sphi 0, %s22
      %s25 = sphi 0, %s23
      %s26 = sphi 0, %s24
      %s27 = sphi 0, %s25
      %s39 = sphi 0, %s41
      %s42 = sphi 0, %s39
      %s43 = sphi 0, %s42
      %s59 = sphi 0, %s43
      %s63 = sphi 0, %s63
      %s65 = sphi 0, %s63
      %s66 = sphi 0, %s65
      %s80 = sphi 0, %s66
      %s84 = sphi 0, %s84
      %s86 = sphi 0, %s84
      %s87 = sphi 0, %s86
      %s101 = sphi 0, %s87
      %s109 = sphi 0, %s111
      %s112 = sphi 0, %s109
      %s113 = sphi 0, %s112
      %s129 = sphi 0, %s113
    $region4: #{tpu_custom_call.1} parent=1 // loop_header_branch
      %18 = sbr.rel (%p16) target = $region8
    $region5: #{tpu_custom_call.1} parent=1 // loop_body
      %s20 = ssub.s32 %s15, 1
      %s21 = ssub.s32 %s15, 2
      %s28 = sadd.s32 1, %s23
      %p29 = scmp.ge.s32.totalorder %s28, 1
      %s30 = scalar_select %p29, 0, %s28
      %s31 = sadd.s32 1, %s22
      %s32 = scalar_select %p29, %s31, %s22
      %p33 = scmp.ge.s32.totalorder %s32, 2
      %s34 = scalar_select %p33, 0, %s32
      %s35 = ssub.s32 %s22, %s34
      %s36 = ssub.s32 %s23, %s30
      %s37 = sor.u32 %s35, %s36
      %p38 = scmp.eq.s32.totalorder %s37, 0
      %s40 = sadd.s32 %s39, 1
      %s41 = scalar_select %p38, %s39, %s40
      %p44 = pneg %p38
      %p45 = scmp.eq.s32.totalorder %s15, 1
      %p46 = por %p44, %p45
      %p47 = scmp.ne.s32.totalorder %s39, %s42
      %p48 = scmp.eq.s32.totalorder %s15, 0
      %p49 = por %p47, %p48
      %p50 = scmp.ne.s32.totalorder %s39, %s42
      %p51 = scmp.eq.s32.totalorder %s20, 1
      %p52 = por %p50, %p51
      %p53 = scmp.ne.s32.totalorder %s42, %s43
      %p54 = scmp.eq.s32.totalorder %s20, 0
      %p55 = por %p53, %p54
      %p56 = scmp.ne.s32.totalorder %s42, %s43
      %p57 = scmp.eq.s32.totalorder %s21, 1
      %p58 = por %p56, %p57
      %p60 = scmp.ne.s32.totalorder %s43, %s59
      %p61 = scmp.eq.s32.totalorder %s21, 0
      %p62 = por %p60, %p61
      %s64 = sadd.s32 %s63, 1
      %p67 = scmp.eq.s32.totalorder %s15, 1
      %p68 = scmp.ne.s32.totalorder %s63, %s65
      %p69 = scmp.eq.s32.totalorder %s15, 0
      %p70 = por %p68, %p69
      %p71 = scmp.ne.s32.totalorder %s63, %s65
      %p72 = scmp.eq.s32.totalorder %s20, 1
      %p73 = por %p71, %p72
      %p74 = scmp.ne.s32.totalorder %s65, %s66
      %p75 = scmp.eq.s32.totalorder %s20, 0
      %p76 = por %p74, %p75
      %p77 = scmp.ne.s32.totalorder %s65, %s66
      %p78 = scmp.eq.s32.totalorder %s21, 1
      %p79 = por %p77, %p78
      %p81 = scmp.ne.s32.totalorder %s66, %s80
      %p82 = scmp.eq.s32.totalorder %s21, 0
      %p83 = por %p81, %p82
      %s85 = sadd.s32 %s84, 1
      %p88 = scmp.eq.s32.totalorder %s15, 1
      %p89 = scmp.ne.s32.totalorder %s84, %s86
      %p90 = scmp.eq.s32.totalorder %s15, 0
      %p91 = por %p89, %p90
      %p92 = scmp.ne.s32.totalorder %s84, %s86
      %p93 = scmp.eq.s32.totalorder %s20, 1
      %p94 = por %p92, %p93
      %p95 = scmp.ne.s32.totalorder %s86, %s87
      %p96 = scmp.eq.s32.totalorder %s20, 0
      %p97 = por %p95, %p96
      %p98 = scmp.ne.s32.totalorder %s86, %s87
      %p99 = scmp.eq.s32.totalorder %s21, 1
      %p100 = por %p98, %p99
      %p102 = scmp.ne.s32.totalorder %s87, %s101
      %p103 = scmp.eq.s32.totalorder %s21, 0
      %p104 = por %p102, %p103
      %s105 = ssub.s32 %s22, %s34
      %s106 = ssub.s32 %s23, %s30
      %s107 = sor.u32 %s105, %s106
      %p108 = scmp.eq.s32.totalorder %s107, 0
      %s110 = sadd.s32 %s109, 1
      %s111 = scalar_select %p108, %s109, %s110
      %p114 = pneg %p108
      %p115 = scmp.eq.s32.totalorder %s15, 1
      %p116 = por %p114, %p115
      %p117 = scmp.ne.s32.totalorder %s109, %s112
      %p118 = scmp.eq.s32.totalorder %s15, 0
      %p119 = por %p117, %p118
      %p120 = scmp.ne.s32.totalorder %s109, %s112
      %p121 = scmp.eq.s32.totalorder %s20, 1
      %p122 = por %p120, %p121
      %p123 = scmp.ne.s32.totalorder %s112, %s113
      %p124 = scmp.eq.s32.totalorder %s20, 0
      %p125 = por %p123, %p124
      %p126 = scmp.ne.s32.totalorder %s112, %s113
      %p127 = scmp.eq.s32.totalorder %s21, 1
      %p128 = por %p126, %p127
      %p130 = scmp.ne.s32.totalorder %s113, %s129
      %p131 = scmp.eq.s32.totalorder %s21, 0
      %p132 = por %p130, %p131
      %p133 = scmp.le.s32.totalorder 1, %s15
      %p134 = scmp.lt.s32.totalorder %s15, 3
      %p135 = pnand %p133, %p134
      %p136 = pneg %p135
      // Predicated region
      $region9: #{tpu_custom_call.1} parent=5 // pred_check
        _
      $region10: #{tpu_custom_call.1} parent=5 // pred_check_branch
        %138 = sbr.rel (%p135) target = $region12
      $region11: #{tpu_custom_call.1} parent=5 // pred_region
        %s139 = ssub.s32 %s15, 1
        // Predicated region
        $region13: #{tpu_custom_call.1} parent=11 // pred_check
          %p140 = pneg %p76
        $region14: #{tpu_custom_call.1} parent=11 // pred_check_branch
          %142 = sbr.rel (%p140) target = $region16
        $region15: #{tpu_custom_call.1} parent=11 // pred_region
          _
        $region16: #{tpu_custom_call.1} parent=11 // pred_fallthru
          _
        // Predicated region
        $region17: #{tpu_custom_call.1} parent=11 // pred_check
          %p143 = pneg %p97
        $region18: #{tpu_custom_call.1} parent=11 // pred_check_branch
          %145 = sbr.rel (%p143) target = $region20
        $region19: #{tpu_custom_call.1} parent=11 // pred_region
          _
        $region20: #{tpu_custom_call.1} parent=11 // pred_fallthru
          _
      $region12: #{tpu_custom_call.1} parent=5 // pred_fallthru
        _
      %p146 = scmp.lt.s32.totalorder %s15, 2
      // Predicated region
      $region21: #{tpu_custom_call.1} parent=5 // pred_check
        %p147 = pneg %p146
      $region22: #{tpu_custom_call.1} parent=5 // pred_check_branch
        %149 = sbr.rel (%p147) target = $region24
      $region23: #{tpu_custom_call.1} parent=5 // pred_region
        // Predicated region
        $region25: #{tpu_custom_call.1} parent=23 // pred_check
          %p150 = pneg %p49
        $region26: #{tpu_custom_call.1} parent=23 // pred_check_branch
          %152 = sbr.rel (%p150) target = $region28
        $region27: #{tpu_custom_call.1} parent=23 // pred_region
          %s153 = sand.u32 %s39, 1
          %s154 = scalar_lea.sflag [#allocation3], %s153
          %s155 = sand.u32 %s39, 1
          %s156 = smul.addr %s155, 128
          %s157 = scalar_lea.vmem [#allocation2], %s156
          %s158 = smul.u32 4, %s23
          %160 = vsyncadd %s154, 0
          %s161 = smul.addr %s22, 16
          %s162 = sadd.s32 %s158, %s161
          %s163 = smul.addr %s162, 8
          %s164 = scalar_lea.hbm %s0, %s163
          %s165 = sshll.u32 %s164, 4
          %s166 = int_to_ptr.hbm [resolvable:$true] %s165
          %s167 = sshll.u32 %s157, 4
          %s168 = int_to_ptr.vmem [resolvable:$true] %s167
          %173 = dma.hbm_to_vmem [thread:$0]  %s166, 2048, %s168, %s154, 512, 512, 32
        $region28: #{tpu_custom_call.1} parent=23 // pred_fallthru
          _
      $region24: #{tpu_custom_call.1} parent=5 // pred_fallthru
        _
      %p174 = scmp.le.s32.totalorder 1, %s15
      %p175 = scmp.lt.s32.totalorder %s15, 3
      %p176 = pnand %p174, %p175
      %p177 = pneg %p176
      // Predicated region
      $region29: #{tpu_custom_call.1} parent=5 // pred_check
        _
      $region30: #{tpu_custom_call.1} parent=5 // pred_check_branch
        %179 = sbr.rel (%p176) target = $region32
      $region31: #{tpu_custom_call.1} parent=5 // pred_region
        %s180 = ssub.s32 %s15, 1
        %s181 = sand.u32 %s42, 1
        %s182 = scalar_lea.sflag [#allocation3], %s181
        %s183 = sand.u32 %s42, 1
        %s184 = smul.addr %s183, 128
        %s185 = scalar_lea.vmem [#allocation2], %s184
        // Predicated region
        $region33: #{tpu_custom_call.1} parent=31 // pred_check
          %p186 = pneg %p55
        $region34: #{tpu_custom_call.1} parent=31 // pred_check_branch
          %188 = sbr.rel (%p186) target = $region36
        $region35: #{tpu_custom_call.1} parent=31 // pred_region
          %190 = dma.done %s182, 2048
        $region36: #{tpu_custom_call.1} parent=31 // pred_fallthru
          _
        %s191 = sand.u32 %s42, 1
        %s192 = scalar_lea.sflag [#allocation3], %s191
        %s193 = sand.u32 %s42, 1
        %s194 = smul.addr %s193, 128
        %s195 = scalar_lea.vmem [#allocation2], %s194
        %p196 = pneg %p55
        %p197 = pneg %p52
        %p198 = pneg %p76
        %p199 = pneg %p73
        %p200 = pneg %p97
        %p201 = pneg %p94
        %p202 = pneg %p125
        %p203 = pneg %p122
        %s204 = sand.u32 %s112, 1
        %s205 = scalar_lea.sflag [#allocation4], %s204
        %s206 = sand.u32 %s112, 1
        %s207 = smul.addr %s206, 32
        %s208 = scalar_lea.vmem [#allocation5], %s207
        %s209 = smul.u32 4, %s25
        %s210 = smul.u32 4, %s25
        %v211 = vld [vmem:[%s1] sm:$0xff]
        %v212 = vld [vmem:[%s185] sm:$0xff]
        %v213 = vld [vmem:[%s185 + $0x8] sm:$0xff]
        %v214 = vld [vmem:[%s185 + $0x10] sm:$0xff]
        %v215 = vld [vmem:[%s185 + $0x18] sm:$0xff]
        %v216 = vld [vmem:[%s185 + $0x20] sm:$0xff]
        %v217 = vld [vmem:[%s185 + $0x28] sm:$0xff]
        %v218 = vld [vmem:[%s185 + $0x30] sm:$0xff]
        %v219 = vld [vmem:[%s185 + $0x38] sm:$0xff]
        %v220 = vld [vmem:[%s185 + $0x40] sm:$0xff]
        %v221 = vld [vmem:[%s185 + $0x48] sm:$0xff]
        %v222 = vld [vmem:[%s185 + $0x50] sm:$0xff]
        %v223 = vld [vmem:[%s185 + $0x58] sm:$0xff]
        %v224 = vld [vmem:[%s185 + $0x60] sm:$0xff]
        %v225 = vld [vmem:[%s185 + $0x68] sm:$0xff]
        %v226 = vld [vmem:[%s185 + $0x70] sm:$0xff]
        %v227 = vld [vmem:[%s185 + $0x78] sm:$0xff]
        %v228 = vld [vmem:[%s2] sm:$0xff]
        %230 = vset.pattern.permute.xlu0 0
        %231 = vperm.xlu0 %230, %v228
        %v232 = vpop.permute.xlu0 %231
        %vm234 = vcmask 261120
        %v236 = vsel %vm234, %v211, 0
        %238 = vmatpush.msra.mxu0 0.0
        %239 = vmatpush.msra.mxu0 0.0
        %240 = vmatpush.msra.mxu0 0.0
        %241 = vmatpush.msra.mxu0 0.0
        %242 = vmatpush.msra.mxu0 0.0
        %243 = vmatpush.msra.mxu0 0.0
        %244 = vmatpush.msra.mxu0 0.0
        %245 = vmatpush.msra.mxu0 0.0
        %246 = vmatpush.msra.mxu0 0.0
        %247 = vmatpush.msra.mxu0 0.0
        %248 = vmatpush.msra.mxu0 0.0
        %249 = vmatpush.msra.mxu0 0.0
        %v250 = vand.u32 %v224, 4294901760
        %251 = vmatpush.msra.mxu0 %v250
        %v252 = vand.u32 %v220, 4294901760
        %253 = vmatpush.msra.mxu0 %v252
        %v254 = vand.u32 %v216, 4294901760
        %255 = vmatpush.msra.mxu0 %v254
        %v256 = vand.u32 %v212, 4294901760
        %257 = vmatpush.msra.mxu0 %v256
        %v258 = vand.u32 %v236, 4294901760
        %v259 = vsub.f32 %v236, %v258
        %v260 = vand.u32 %v259, 4294901760
        %v261 = vsub.f32 %v259, %v260
        %v262 = vand.u32 %v261, 4294901760
        %263 = vmatmul.f32.gmra.mxu0 %v262
        %v264 = vpop.f32.mrf.mxu0
        %v265 = vadd.f32 %v232, %v264
        %266 = vdwg.mxu0
        %267 = vmatpush.msra.mxu0 0.0
        %268 = vmatpush.msra.mxu0 0.0
        %269 = vmatpush.msra.mxu0 0.0
        %270 = vmatpush.msra.mxu0 0.0
        %271 = vmatpush.msra.mxu0 0.0
        %272 = vmatpush.msra.mxu0 0.0
        %273 = vmatpush.msra.mxu0 0.0
        %274 = vmatpush.msra.mxu0 0.0
        %275 = vmatpush.msra.mxu0 0.0
        %276 = vmatpush.msra.mxu0 0.0
        %277 = vmatpush.msra.mxu0 0.0
        %278 = vmatpush.msra.mxu0 0.0
        %v279 = vand.u32 %v224, 4294901760
        %v280 = vsub.f32 %v224, %v279
        %v281 = vand.u32 %v280, 4294901760
        %v282 = vsub.f32 %v280, %v281
        %v283 = vand.u32 %v282, 4294901760
        %284 = vmatpush.msra.mxu0 %v283
        %v285 = vand.u32 %v220, 4294901760
        %v286 = vsub.f32 %v220, %v285
        %v287 = vand.u32 %v286, 4294901760
        %v288 = vsub.f32 %v286, %v287
        %v289 = vand.u32 %v288, 4294901760
        %290 = vmatpush.msra.mxu0 %v289
        %v291 = vand.u32 %v216, 4294901760
        %v292 = vsub.f32 %v216, %v291
        %v293 = vand.u32 %v292, 4294901760
        %v294 = vsub.f32 %v292, %v293
        %v295 = vand.u32 %v294, 4294901760
        %296 = vmatpush.msra.mxu0 %v295
        %v297 = vand.u32 %v212, 4294901760
        %v298 = vsub.f32 %v212, %v297
        %v299 = vand.u32 %v298, 4294901760
        %v300 = vsub.f32 %v298, %v299
        %v301 = vand.u32 %v300, 4294901760
        %302 = vmatpush.msra.mxu0 %v301
        %v303 = vand.u32 %v236, 4294901760
        %304 = vmatmul.f32.gmra.mxu0 %v303
        %v305 = vpop.f32.mrf.mxu0
        %v306 = vadd.f32 %v265, %v305
        %307 = vdwg.mxu0
        %308 = vmatpush.msra.mxu0 0.0
        %309 = vmatpush.msra.mxu0 0.0
        %310 = vmatpush.msra.mxu0 0.0
        %311 = vmatpush.msra.mxu0 0.0
        %312 = vmatpush.msra.mxu0 0.0
        %313 = vmatpush.msra.mxu0 0.0
        %314 = vmatpush.msra.mxu0 0.0
        %315 = vmatpush.msra.mxu0 0.0
        %316 = vmatpush.msra.mxu0 0.0
        %317 = vmatpush.msra.mxu0 0.0
        %318 = vmatpush.msra.mxu0 0.0
        %319 = vmatpush.msra.mxu0 0.0
        %v320 = vand.u32 %v224, 4294901760
        %v321 = vsub.f32 %v224, %v320
        %322 = vmatpush.msra.mxu0 %v321
        %v323 = vand.u32 %v220, 4294901760
        %v324 = vsub.f32 %v220, %v323
        %325 = vmatpush.msra.mxu0 %v324
        %v326 = vand.u32 %v216, 4294901760
        %v327 = vsub.f32 %v216, %v326
        %328 = vmatpush.msra.mxu0 %v327
        %v329 = vand.u32 %v212, 4294901760
        %v330 = vsub.f32 %v212, %v329
        %331 = vmatpush.msra.mxu0 %v330
        %v332 = vand.u32 %v236, 4294901760
        %v333 = vsub.f32 %v236, %v332
        %334 = vmatmul.f32.gmra.mxu0 %v333
        %v335 = vpop.f32.mrf.mxu0
        %v336 = vadd.f32 %v306, %v335
        %337 = vdwg.mxu0
        %338 = vmatpush.msra.mxu0 0.0
        %339 = vmatpush.msra.mxu0 0.0
        %340 = vmatpush.msra.mxu0 0.0
        %341 = vmatpush.msra.mxu0 0.0
        %342 = vmatpush.msra.mxu0 0.0
        %343 = vmatpush.msra.mxu0 0.0
        %344 = vmatpush.msra.mxu0 0.0
        %345 = vmatpush.msra.mxu0 0.0
        %346 = vmatpush.msra.mxu0 0.0
        %347 = vmatpush.msra.mxu0 0.0
        %348 = vmatpush.msra.mxu0 0.0
        %349 = vmatpush.msra.mxu0 0.0
        %v350 = vand.u32 %v224, 4294901760
        %351 = vmatpush.msra.mxu0 %v350
        %v352 = vand.u32 %v220, 4294901760
        %353 = vmatpush.msra.mxu0 %v352
        %v354 = vand.u32 %v216, 4294901760
        %355 = vmatpush.msra.mxu0 %v354
        %v356 = vand.u32 %v212, 4294901760
        %357 = vmatpush.msra.mxu0 %v356
        %v358 = vand.u32 %v236, 4294901760
        %v359 = vsub.f32 %v236, %v358
        %v360 = vand.u32 %v359, 4294901760
        %361 = vmatmul.f32.gmra.mxu0 %v360
        %v362 = vpop.f32.mrf.mxu0
        %v363 = vadd.f32 %v336, %v362
        %364 = vdwg.mxu0
        %365 = vmatpush.msra.mxu0 0.0
        %366 = vmatpush.msra.mxu0 0.0
        %367 = vmatpush.msra.mxu0 0.0
        %368 = vmatpush.msra.mxu0 0.0
        %369 = vmatpush.msra.mxu0 0.0
        %370 = vmatpush.msra.mxu0 0.0
        %371 = vmatpush.msra.mxu0 0.0
        %372 = vmatpush.msra.mxu0 0.0
        %373 = vmatpush.msra.mxu0 0.0
        %374 = vmatpush.msra.mxu0 0.0
        %375 = vmatpush.msra.mxu0 0.0
        %376 = vmatpush.msra.mxu0 0.0
        %v377 = vand.u32 %v224, 4294901760
        %v378 = vsub.f32 %v224, %v377
        %v379 = vand.u32 %v378, 4294901760
        %380 = vmatpush.msra.mxu0 %v379
        %v381 = vand.u32 %v220, 4294901760
        %v382 = vsub.f32 %v220, %v381
        %v383 = vand.u32 %v382, 4294901760
        %384 = vmatpush.msra.mxu0 %v383
        %v385 = vand.u32 %v216, 4294901760
        %v386 = vsub.f32 %v216, %v385
        %v387 = vand.u32 %v386, 4294901760
        %388 = vmatpush.msra.mxu0 %v387
        %v389 = vand.u32 %v212, 4294901760
        %v390 = vsub.f32 %v212, %v389
        %v391 = vand.u32 %v390, 4294901760
        %392 = vmatpush.msra.mxu0 %v391
        %v393 = vand.u32 %v236, 4294901760
        %394 = vmatmul.f32.gmra.mxu0 %v393
        %v395 = vpop.f32.mrf.mxu0
        %v396 = vadd.f32 %v363, %v395
        %397 = vdwg.mxu0
        %398 = vmatpush.msra.mxu0 0.0
        %399 = vmatpush.msra.mxu0 0.0
        %400 = vmatpush.msra.mxu0 0.0
        %401 = vmatpush.msra.mxu0 0.0
        %402 = vmatpush.msra.mxu0 0.0
        %403 = vmatpush.msra.mxu0 0.0
        %404 = vmatpush.msra.mxu0 0.0
        %405 = vmatpush.msra.mxu0 0.0
        %406 = vmatpush.msra.mxu0 0.0
        %407 = vmatpush.msra.mxu0 0.0
        %408 = vmatpush.msra.mxu0 0.0
        %409 = vmatpush.msra.mxu0 0.0
        %v410 = vand.u32 %v224, 4294901760
        %411 = vmatpush.msra.mxu0 %v410
        %v412 = vand.u32 %v220, 4294901760
        %413 = vmatpush.msra.mxu0 %v412
        %v414 = vand.u32 %v216, 4294901760
        %415 = vmatpush.msra.mxu0 %v414
        %v416 = vand.u32 %v212, 4294901760
        %417 = vmatpush.msra.mxu0 %v416
        %v418 = vand.u32 %v236, 4294901760
        %419 = vmatmul.f32.gmra.mxu0 %v418
        %v420 = vpop.f32.mrf.mxu0
        %v421 = vadd.f32 %v396, %v420
        %422 = vdwg.mxu0
        %423 = vmatpush.msra.mxu0 0.0
        %424 = vmatpush.msra.mxu0 0.0
        %425 = vmatpush.msra.mxu0 0.0
        %426 = vmatpush.msra.mxu0 0.0
        %427 = vmatpush.msra.mxu0 0.0
        %428 = vmatpush.msra.mxu0 0.0
        %429 = vmatpush.msra.mxu0 0.0
        %430 = vmatpush.msra.mxu0 0.0
        %431 = vmatpush.msra.mxu0 0.0
        %432 = vmatpush.msra.mxu0 0.0
        %433 = vmatpush.msra.mxu0 0.0
        %434 = vmatpush.msra.mxu0 0.0
        %v435 = vand.u32 %v225, 4294901760
        %436 = vmatpush.msra.mxu0 %v435
        %v437 = vand.u32 %v221, 4294901760
        %438 = vmatpush.msra.mxu0 %v437
        %v439 = vand.u32 %v217, 4294901760
        %440 = vmatpush.msra.mxu0 %v439
        %v441 = vand.u32 %v213, 4294901760
        %442 = vmatpush.msra.mxu0 %v441
        %v443 = vand.u32 %v236, 4294901760
        %v444 = vsub.f32 %v236, %v443
        %v445 = vand.u32 %v444, 4294901760
        %v446 = vsub.f32 %v444, %v445
        %v447 = vand.u32 %v446, 4294901760
        %448 = vmatmul.f32.gmra.mxu0 %v447
        %v449 = vpop.f32.mrf.mxu0
        %v450 = vadd.f32 %v232, %v449
        %451 = vdwg.mxu0
        %452 = vmatpush.msra.mxu0 0.0
        %453 = vmatpush.msra.mxu0 0.0
        %454 = vmatpush.msra.mxu0 0.0
        %455 = vmatpush.msra.mxu0 0.0
        %456 = vmatpush.msra.mxu0 0.0
        %457 = vmatpush.msra.mxu0 0.0
        %458 = vmatpush.msra.mxu0 0.0
        %459 = vmatpush.msra.mxu0 0.0
        %460 = vmatpush.msra.mxu0 0.0
        %461 = vmatpush.msra.mxu0 0.0
        %462 = vmatpush.msra.mxu0 0.0
        %463 = vmatpush.msra.mxu0 0.0
        %v464 = vand.u32 %v225, 4294901760
        %v465 = vsub.f32 %v225, %v464
        %v466 = vand.u32 %v465, 4294901760
        %v467 = vsub.f32 %v465, %v466
        %v468 = vand.u32 %v467, 4294901760
        %469 = vmatpush.msra.mxu0 %v468
        %v470 = vand.u32 %v221, 4294901760
        %v471 = vsub.f32 %v221, %v470
        %v472 = vand.u32 %v471, 4294901760
        %v473 = vsub.f32 %v471, %v472
        %v474 = vand.u32 %v473, 4294901760
        %475 = vmatpush.msra.mxu0 %v474
        %v476 = vand.u32 %v217, 4294901760
        %v477 = vsub.f32 %v217, %v476
        %v478 = vand.u32 %v477, 4294901760
        %v479 = vsub.f32 %v477, %v478
        %v480 = vand.u32 %v479, 4294901760
        %481 = vmatpush.msra.mxu0 %v480
        %v482 = vand.u32 %v213, 4294901760
        %v483 = vsub.f32 %v213, %v482
        %v484 = vand.u32 %v483, 4294901760
        %v485 = vsub.f32 %v483, %v484
        %v486 = vand.u32 %v485, 4294901760
        %487 = vmatpush.msra.mxu0 %v486
        %v488 = vand.u32 %v236, 4294901760
        %489 = vmatmul.f32.gmra.mxu0 %v488
        %v490 = vpop.f32.mrf.mxu0
        %v491 = vadd.f32 %v450, %v490
        %492 = vdwg.mxu0
        %493 = vmatpush.msra.mxu0 0.0
        %494 = vmatpush.msra.mxu0 0.0
        %495 = vmatpush.msra.mxu0 0.0
        %496 = vmatpush.msra.mxu0 0.0
        %497 = vmatpush.msra.mxu0 0.0
        %498 = vmatpush.msra.mxu0 0.0
        %499 = vmatpush.msra.mxu0 0.0
        %500 = vmatpush.msra.mxu0 0.0
        %501 = vmatpush.msra.mxu0 0.0
        %502 = vmatpush.msra.mxu0 0.0
        %503 = vmatpush.msra.mxu0 0.0
        %504 = vmatpush.msra.mxu0 0.0
        %v505 = vand.u32 %v225, 4294901760
        %v506 = vsub.f32 %v225, %v505
        %507 = vmatpush.msra.mxu0 %v506
        %v508 = vand.u32 %v221, 4294901760
        %v509 = vsub.f32 %v221, %v508
        %510 = vmatpush.msra.mxu0 %v509
        %v511 = vand.u32 %v217, 4294901760
        %v512 = vsub.f32 %v217, %v511
        %513 = vmatpush.msra.mxu0 %v512
        %v514 = vand.u32 %v213, 4294901760
        %v515 = vsub.f32 %v213, %v514
        %516 = vmatpush.msra.mxu0 %v515
        %v517 = vand.u32 %v236, 4294901760
        %v518 = vsub.f32 %v236, %v517
        %519 = vmatmul.f32.gmra.mxu0 %v518
        %v520 = vpop.f32.mrf.mxu0
        %v521 = vadd.f32 %v491, %v520
        %522 = vdwg.mxu0
        %523 = vmatpush.msra.mxu0 0.0
        %524 = vmatpush.msra.mxu0 0.0
        %525 = vmatpush.msra.mxu0 0.0
        %526 = vmatpush.msra.mxu0 0.0
        %527 = vmatpush.msra.mxu0 0.0
        %528 = vmatpush.msra.mxu0 0.0
        %529 = vmatpush.msra.mxu0 0.0
        %530 = vmatpush.msra.mxu0 0.0
        %531 = vmatpush.msra.mxu0 0.0
        %532 = vmatpush.msra.mxu0 0.0
        %533 = vmatpush.msra.mxu0 0.0
        %534 = vmatpush.msra.mxu0 0.0
        %v535 = vand.u32 %v225, 4294901760
        %536 = vmatpush.msra.mxu0 %v535
        %v537 = vand.u32 %v221, 4294901760
        %538 = vmatpush.msra.mxu0 %v537
        %v539 = vand.u32 %v217, 4294901760
        %540 = vmatpush.msra.mxu0 %v539
        %v541 = vand.u32 %v213, 4294901760
        %542 = vmatpush.msra.mxu0 %v541
        %v543 = vand.u32 %v236, 4294901760
        %v544 = vsub.f32 %v236, %v543
        %v545 = vand.u32 %v544, 4294901760
        %546 = vmatmul.f32.gmra.mxu0 %v545
        %v547 = vpop.f32.mrf.mxu0
        %v548 = vadd.f32 %v521, %v547
        %549 = vdwg.mxu0
        %550 = vmatpush.msra.mxu0 0.0
        %551 = vmatpush.msra.mxu0 0.0
        %552 = vmatpush.msra.mxu0 0.0
        %553 = vmatpush.msra.mxu0 0.0
        %554 = vmatpush.msra.mxu0 0.0
        %555 = vmatpush.msra.mxu0 0.0
        %556 = vmatpush.msra.mxu0 0.0
        %557 = vmatpush.msra.mxu0 0.0
        %558 = vmatpush.msra.mxu0 0.0
        %559 = vmatpush.msra.mxu0 0.0
        %560 = vmatpush.msra.mxu0 0.0
        %561 = vmatpush.msra.mxu0 0.0
        %v562 = vand.u32 %v225, 4294901760
        %v563 = vsub.f32 %v225, %v562
        %v564 = vand.u32 %v563, 4294901760
        %565 = vmatpush.msra.mxu0 %v564
        %v566 = vand.u32 %v221, 4294901760
        %v567 = vsub.f32 %v221, %v566
        %v568 = vand.u32 %v567, 4294901760
        %569 = vmatpush.msra.mxu0 %v568
        %v570 = vand.u32 %v217, 4294901760
        %v571 = vsub.f32 %v217, %v570
        %v572 = vand.u32 %v571, 4294901760
        %573 = vmatpush.msra.mxu0 %v572
        %v574 = vand.u32 %v213, 4294901760
        %v575 = vsub.f32 %v213, %v574
        %v576 = vand.u32 %v575, 4294901760
        %577 = vmatpush.msra.mxu0 %v576
        %v578 = vand.u32 %v236, 4294901760
        %579 = vmatmul.f32.gmra.mxu0 %v578
        %v580 = vpop.f32.mrf.mxu0
        %v581 = vadd.f32 %v548, %v580
        %582 = vdwg.mxu0
        %583 = vmatpush.msra.mxu0 0.0
        %584 = vmatpush.msra.mxu0 0.0
        %585 = vmatpush.msra.mxu0 0.0
        %586 = vmatpush.msra.mxu0 0.0
        %587 = vmatpush.msra.mxu0 0.0
        %588 = vmatpush.msra.mxu0 0.0
        %589 = vmatpush.msra.mxu0 0.0
        %590 = vmatpush.msra.mxu0 0.0
        %591 = vmatpush.msra.mxu0 0.0
        %592 = vmatpush.msra.mxu0 0.0
        %593 = vmatpush.msra.mxu0 0.0
        %594 = vmatpush.msra.mxu0 0.0
        %v595 = vand.u32 %v225, 4294901760
        %596 = vmatpush.msra.mxu0 %v595
        %v597 = vand.u32 %v221, 4294901760
        %598 = vmatpush.msra.mxu0 %v597
        %v599 = vand.u32 %v217, 4294901760
        %600 = vmatpush.msra.mxu0 %v599
        %v601 = vand.u32 %v213, 4294901760
        %602 = vmatpush.msra.mxu0 %v601
        %v603 = vand.u32 %v236, 4294901760
        %604 = vmatmul.f32.gmra.mxu0 %v603
        %v605 = vpop.f32.mrf.mxu0
        %v606 = vadd.f32 %v581, %v605
        %607 = vdwg.mxu0
        %608 = vmatpush.msra.mxu0 0.0
        %609 = vmatpush.msra.mxu0 0.0
        %610 = vmatpush.msra.mxu0 0.0
        %611 = vmatpush.msra.mxu0 0.0
        %612 = vmatpush.msra.mxu0 0.0
        %613 = vmatpush.msra.mxu0 0.0
        %614 = vmatpush.msra.mxu0 0.0
        %615 = vmatpush.msra.mxu0 0.0
        %616 = vmatpush.msra.mxu0 0.0
        %617 = vmatpush.msra.mxu0 0.0
        %618 = vmatpush.msra.mxu0 0.0
        %619 = vmatpush.msra.mxu0 0.0
        %v620 = vand.u32 %v226, 4294901760
        %621 = vmatpush.msra.mxu0 %v620
        %v622 = vand.u32 %v222, 4294901760
        %623 = vmatpush.msra.mxu0 %v622
        %v624 = vand.u32 %v218, 4294901760
        %625 = vmatpush.msra.mxu0 %v624
        %v626 = vand.u32 %v214, 4294901760
        %627 = vmatpush.msra.mxu0 %v626
        %v628 = vand.u32 %v236, 4294901760
        %v629 = vsub.f32 %v236, %v628
        %v630 = vand.u32 %v629, 4294901760
        %v631 = vsub.f32 %v629, %v630
        %v632 = vand.u32 %v631, 4294901760
        %633 = vmatmul.f32.gmra.mxu0 %v632
        %v634 = vpop.f32.mrf.mxu0
        %v635 = vadd.f32 %v232, %v634
        %636 = vdwg.mxu0
        %637 = vmatpush.msra.mxu0 0.0
        %638 = vmatpush.msra.mxu0 0.0
        %639 = vmatpush.msra.mxu0 0.0
        %640 = vmatpush.msra.mxu0 0.0
        %641 = vmatpush.msra.mxu0 0.0
        %642 = vmatpush.msra.mxu0 0.0
        %643 = vmatpush.msra.mxu0 0.0
        %644 = vmatpush.msra.mxu0 0.0
        %645 = vmatpush.msra.mxu0 0.0
        %646 = vmatpush.msra.mxu0 0.0
        %647 = vmatpush.msra.mxu0 0.0
        %648 = vmatpush.msra.mxu0 0.0
        %v649 = vand.u32 %v226, 4294901760
        %v650 = vsub.f32 %v226, %v649
        %v651 = vand.u32 %v650, 4294901760
        %v652 = vsub.f32 %v650, %v651
        %v653 = vand.u32 %v652, 4294901760
        %654 = vmatpush.msra.mxu0 %v653
        %v655 = vand.u32 %v222, 4294901760
        %v656 = vsub.f32 %v222, %v655
        %v657 = vand.u32 %v656, 4294901760
        %v658 = vsub.f32 %v656, %v657
        %v659 = vand.u32 %v658, 4294901760
        %660 = vmatpush.msra.mxu0 %v659
        %v661 = vand.u32 %v218, 4294901760
        %v662 = vsub.f32 %v218, %v661
        %v663 = vand.u32 %v662, 4294901760
        %v664 = vsub.f32 %v662, %v663
        %v665 = vand.u32 %v664, 4294901760
        %666 = vmatpush.msra.mxu0 %v665
        %v667 = vand.u32 %v214, 4294901760
        %v668 = vsub.f32 %v214, %v667
        %v669 = vand.u32 %v668, 4294901760
        %v670 = vsub.f32 %v668, %v669
        %v671 = vand.u32 %v670, 4294901760
        %672 = vmatpush.msra.mxu0 %v671
        %v673 = vand.u32 %v236, 4294901760
        %674 = vmatmul.f32.gmra.mxu0 %v673
        %v675 = vpop.f32.mrf.mxu0
        %v676 = vadd.f32 %v635, %v675
        %677 = vdwg.mxu0
        %678 = vmatpush.msra.mxu0 0.0
        %679 = vmatpush.msra.mxu0 0.0
        %680 = vmatpush.msra.mxu0 0.0
        %681 = vmatpush.msra.mxu0 0.0
        %682 = vmatpush.msra.mxu0 0.0
        %683 = vmatpush.msra.mxu0 0.0
        %684 = vmatpush.msra.mxu0 0.0
        %685 = vmatpush.msra.mxu0 0.0
        %686 = vmatpush.msra.mxu0 0.0
        %687 = vmatpush.msra.mxu0 0.0
        %688 = vmatpush.msra.mxu0 0.0
        %689 = vmatpush.msra.mxu0 0.0
        %v690 = vand.u32 %v226, 4294901760
        %v691 = vsub.f32 %v226, %v690
        %692 = vmatpush.msra.mxu0 %v691
        %v693 = vand.u32 %v222, 4294901760
        %v694 = vsub.f32 %v222, %v693
        %695 = vmatpush.msra.mxu0 %v694
        %v696 = vand.u32 %v218, 4294901760
        %v697 = vsub.f32 %v218, %v696
        %698 = vmatpush.msra.mxu0 %v697
        %v699 = vand.u32 %v214, 4294901760
        %v700 = vsub.f32 %v214, %v699
        %701 = vmatpush.msra.mxu0 %v700
        %v702 = vand.u32 %v236, 4294901760
        %v703 = vsub.f32 %v236, %v702
        %704 = vmatmul.f32.gmra.mxu0 %v703
        %v705 = vpop.f32.mrf.mxu0
        %v706 = vadd.f32 %v676, %v705
        %707 = vdwg.mxu0
        %708 = vmatpush.msra.mxu0 0.0
        %709 = vmatpush.msra.mxu0 0.0
        %710 = vmatpush.msra.mxu0 0.0
        %711 = vmatpush.msra.mxu0 0.0
        %712 = vmatpush.msra.mxu0 0.0
        %713 = vmatpush.msra.mxu0 0.0
        %714 = vmatpush.msra.mxu0 0.0
        %715 = vmatpush.msra.mxu0 0.0
        %716 = vmatpush.msra.mxu0 0.0
        %717 = vmatpush.msra.mxu0 0.0
        %718 = vmatpush.msra.mxu0 0.0
        %719 = vmatpush.msra.mxu0 0.0
        %v720 = vand.u32 %v226, 4294901760
        %721 = vmatpush.msra.mxu0 %v720
        %v722 = vand.u32 %v222, 4294901760
        %723 = vmatpush.msra.mxu0 %v722
        %v724 = vand.u32 %v218, 4294901760
        %725 = vmatpush.msra.mxu0 %v724
        %v726 = vand.u32 %v214, 4294901760
        %727 = vmatpush.msra.mxu0 %v726
        %v728 = vand.u32 %v236, 4294901760
        %v729 = vsub.f32 %v236, %v728
        %v730 = vand.u32 %v729, 4294901760
        %731 = vmatmul.f32.gmra.mxu0 %v730
        %v732 = vpop.f32.mrf.mxu0
        %v733 = vadd.f32 %v706, %v732
        %734 = vdwg.mxu0
        %735 = vmatpush.msra.mxu0 0.0
        %736 = vmatpush.msra.mxu0 0.0
        %737 = vmatpush.msra.mxu0 0.0
        %738 = vmatpush.msra.mxu0 0.0
        %739 = vmatpush.msra.mxu0 0.0
        %740 = vmatpush.msra.mxu0 0.0
        %741 = vmatpush.msra.mxu0 0.0
        %742 = vmatpush.msra.mxu0 0.0
        %743 = vmatpush.msra.mxu0 0.0
        %744 = vmatpush.msra.mxu0 0.0
        %745 = vmatpush.msra.mxu0 0.0
        %746 = vmatpush.msra.mxu0 0.0
        %v747 = vand.u32 %v226, 4294901760
        %v748 = vsub.f32 %v226, %v747
        %v749 = vand.u32 %v748, 4294901760
        %750 = vmatpush.msra.mxu0 %v749
        %v751 = vand.u32 %v222, 4294901760
        %v752 = vsub.f32 %v222, %v751
        %v753 = vand.u32 %v752, 4294901760
        %754 = vmatpush.msra.mxu0 %v753
        %v755 = vand.u32 %v218, 4294901760
        %v756 = vsub.f32 %v218, %v755
        %v757 = vand.u32 %v756, 4294901760
        %758 = vmatpush.msra.mxu0 %v757
        %v759 = vand.u32 %v214, 4294901760
        %v760 = vsub.f32 %v214, %v759
        %v761 = vand.u32 %v760, 4294901760
        %762 = vmatpush.msra.mxu0 %v761
        %v763 = vand.u32 %v236, 4294901760
        %764 = vmatmul.f32.gmra.mxu0 %v763
        %v765 = vpop.f32.mrf.mxu0
        %v766 = vadd.f32 %v733, %v765
        %767 = vdwg.mxu0
        %768 = vmatpush.msra.mxu0 0.0
        %769 = vmatpush.msra.mxu0 0.0
        %770 = vmatpush.msra.mxu0 0.0
        %771 = vmatpush.msra.mxu0 0.0
        %772 = vmatpush.msra.mxu0 0.0
        %773 = vmatpush.msra.mxu0 0.0
        %774 = vmatpush.msra.mxu0 0.0
        %775 = vmatpush.msra.mxu0 0.0
        %776 = vmatpush.msra.mxu0 0.0
        %777 = vmatpush.msra.mxu0 0.0
        %778 = vmatpush.msra.mxu0 0.0
        %779 = vmatpush.msra.mxu0 0.0
        %v780 = vand.u32 %v226, 4294901760
        %781 = vmatpush.msra.mxu0 %v780
        %v782 = vand.u32 %v222, 4294901760
        %783 = vmatpush.msra.mxu0 %v782
        %v784 = vand.u32 %v218, 4294901760
        %785 = vmatpush.msra.mxu0 %v784
        %v786 = vand.u32 %v214, 4294901760
        %787 = vmatpush.msra.mxu0 %v786
        %v788 = vand.u32 %v236, 4294901760
        %789 = vmatmul.f32.gmra.mxu0 %v788
        %v790 = vpop.f32.mrf.mxu0
        %v791 = vadd.f32 %v766, %v790
        %792 = vdwg.mxu0
        %793 = vmatpush.msra.mxu0 0.0
        %794 = vmatpush.msra.mxu0 0.0
        %795 = vmatpush.msra.mxu0 0.0
        %796 = vmatpush.msra.mxu0 0.0
        %797 = vmatpush.msra.mxu0 0.0
        %798 = vmatpush.msra.mxu0 0.0
        %799 = vmatpush.msra.mxu0 0.0
        %800 = vmatpush.msra.mxu0 0.0
        %801 = vmatpush.msra.mxu0 0.0
        %802 = vmatpush.msra.mxu0 0.0
        %803 = vmatpush.msra.mxu0 0.0
        %804 = vmatpush.msra.mxu0 0.0
        %v805 = vand.u32 %v227, 4294901760
        %806 = vmatpush.msra.mxu0 %v805
        %v807 = vand.u32 %v223, 4294901760
        %808 = vmatpush.msra.mxu0 %v807
        %v809 = vand.u32 %v219, 4294901760
        %810 = vmatpush.msra.mxu0 %v809
        %v811 = vand.u32 %v215, 4294901760
        %812 = vmatpush.msra.mxu0 %v811
        %v813 = vand.u32 %v236, 4294901760
        %v814 = vsub.f32 %v236, %v813
        %v815 = vand.u32 %v814, 4294901760
        %v816 = vsub.f32 %v814, %v815
        %v817 = vand.u32 %v816, 4294901760
        %818 = vmatmul.f32.gmra.mxu0 %v817
        %v819 = vpop.f32.mrf.mxu0
        %v820 = vadd.f32 %v232, %v819
        %821 = vdwg.mxu0
        %822 = vmatpush.msra.mxu0 0.0
        %823 = vmatpush.msra.mxu0 0.0
        %824 = vmatpush.msra.mxu0 0.0
        %825 = vmatpush.msra.mxu0 0.0
        %826 = vmatpush.msra.mxu0 0.0
        %827 = vmatpush.msra.mxu0 0.0
        %828 = vmatpush.msra.mxu0 0.0
        %829 = vmatpush.msra.mxu0 0.0
        %830 = vmatpush.msra.mxu0 0.0
        %831 = vmatpush.msra.mxu0 0.0
        %832 = vmatpush.msra.mxu0 0.0
        %833 = vmatpush.msra.mxu0 0.0
        %v834 = vand.u32 %v227, 4294901760
        %v835 = vsub.f32 %v227, %v834
        %v836 = vand.u32 %v835, 4294901760
        %v837 = vsub.f32 %v835, %v836
        %v838 = vand.u32 %v837, 4294901760
        %839 = vmatpush.msra.mxu0 %v838
        %v840 = vand.u32 %v223, 4294901760
        %v841 = vsub.f32 %v223, %v840
        %v842 = vand.u32 %v841, 4294901760
        %v843 = vsub.f32 %v841, %v842
        %v844 = vand.u32 %v843, 4294901760
        %845 = vmatpush.msra.mxu0 %v844
        %v846 = vand.u32 %v219, 4294901760
        %v847 = vsub.f32 %v219, %v846
        %v848 = vand.u32 %v847, 4294901760
        %v849 = vsub.f32 %v847, %v848
        %v850 = vand.u32 %v849, 4294901760
        %851 = vmatpush.msra.mxu0 %v850
        %v852 = vand.u32 %v215, 4294901760
        %v853 = vsub.f32 %v215, %v852
        %v854 = vand.u32 %v853, 4294901760
        %v855 = vsub.f32 %v853, %v854
        %v856 = vand.u32 %v855, 4294901760
        %857 = vmatpush.msra.mxu0 %v856
        %v858 = vand.u32 %v236, 4294901760
        %859 = vmatmul.f32.gmra.mxu0 %v858
        %v860 = vpop.f32.mrf.mxu0
        %v861 = vadd.f32 %v820, %v860
        %862 = vdwg.mxu0
        %863 = vmatpush.msra.mxu0 0.0
        %864 = vmatpush.msra.mxu0 0.0
        %865 = vmatpush.msra.mxu0 0.0
        %866 = vmatpush.msra.mxu0 0.0
        %867 = vmatpush.msra.mxu0 0.0
        %868 = vmatpush.msra.mxu0 0.0
        %869 = vmatpush.msra.mxu0 0.0
        %870 = vmatpush.msra.mxu0 0.0
        %871 = vmatpush.msra.mxu0 0.0
        %872 = vmatpush.msra.mxu0 0.0
        %873 = vmatpush.msra.mxu0 0.0
        %874 = vmatpush.msra.mxu0 0.0
        %v875 = vand.u32 %v227, 4294901760
        %v876 = vsub.f32 %v227, %v875
        %877 = vmatpush.msra.mxu0 %v876
        %v878 = vand.u32 %v223, 4294901760
        %v879 = vsub.f32 %v223, %v878
        %880 = vmatpush.msra.mxu0 %v879
        %v881 = vand.u32 %v219, 4294901760
        %v882 = vsub.f32 %v219, %v881
        %883 = vmatpush.msra.mxu0 %v882
        %v884 = vand.u32 %v215, 4294901760
        %v885 = vsub.f32 %v215, %v884
        %886 = vmatpush.msra.mxu0 %v885
        %v887 = vand.u32 %v236, 4294901760
        %v888 = vsub.f32 %v236, %v887
        %889 = vmatmul.f32.gmra.mxu0 %v888
        %v890 = vpop.f32.mrf.mxu0
        %v891 = vadd.f32 %v861, %v890
        %892 = vdwg.mxu0
        %893 = vmatpush.msra.mxu0 0.0
        %894 = vmatpush.msra.mxu0 0.0
        %895 = vmatpush.msra.mxu0 0.0
        %896 = vmatpush.msra.mxu0 0.0
        %897 = vmatpush.msra.mxu0 0.0
        %898 = vmatpush.msra.mxu0 0.0
        %899 = vmatpush.msra.mxu0 0.0
        %900 = vmatpush.msra.mxu0 0.0
        %901 = vmatpush.msra.mxu0 0.0
        %902 = vmatpush.msra.mxu0 0.0
        %903 = vmatpush.msra.mxu0 0.0
        %904 = vmatpush.msra.mxu0 0.0
        %v905 = vand.u32 %v227, 4294901760
        %906 = vmatpush.msra.mxu0 %v905
        %v907 = vand.u32 %v223, 4294901760
        %908 = vmatpush.msra.mxu0 %v907
        %v909 = vand.u32 %v219, 4294901760
        %910 = vmatpush.msra.mxu0 %v909
        %v911 = vand.u32 %v215, 4294901760
        %912 = vmatpush.msra.mxu0 %v911
        %v913 = vand.u32 %v236, 4294901760
        %v914 = vsub.f32 %v236, %v913
        %v915 = vand.u32 %v914, 4294901760
        %916 = vmatmul.f32.gmra.mxu0 %v915
        %v917 = vpop.f32.mrf.mxu0
        %v918 = vadd.f32 %v891, %v917
        %919 = vdwg.mxu0
        %920 = vmatpush.msra.mxu0 0.0
        %921 = vmatpush.msra.mxu0 0.0
        %922 = vmatpush.msra.mxu0 0.0
        %923 = vmatpush.msra.mxu0 0.0
        %924 = vmatpush.msra.mxu0 0.0
        %925 = vmatpush.msra.mxu0 0.0
        %926 = vmatpush.msra.mxu0 0.0
        %927 = vmatpush.msra.mxu0 0.0
        %928 = vmatpush.msra.mxu0 0.0
        %929 = vmatpush.msra.mxu0 0.0
        %930 = vmatpush.msra.mxu0 0.0
        %931 = vmatpush.msra.mxu0 0.0
        %v932 = vand.u32 %v227, 4294901760
        %v933 = vsub.f32 %v227, %v932
        %v934 = vand.u32 %v933, 4294901760
        %935 = vmatpush.msra.mxu0 %v934
        %v936 = vand.u32 %v223, 4294901760
        %v937 = vsub.f32 %v223, %v936
        %v938 = vand.u32 %v937, 4294901760
        %939 = vmatpush.msra.mxu0 %v938
        %v940 = vand.u32 %v219, 4294901760
        %v941 = vsub.f32 %v219, %v940
        %v942 = vand.u32 %v941, 4294901760
        %943 = vmatpush.msra.mxu0 %v942
        %v944 = vand.u32 %v215, 4294901760
        %v945 = vsub.f32 %v215, %v944
        %v946 = vand.u32 %v945, 4294901760
        %947 = vmatpush.msra.mxu0 %v946
        %v948 = vand.u32 %v236, 4294901760
        %949 = vmatmul.f32.gmra.mxu0 %v948
        %v950 = vpop.f32.mrf.mxu0
        %v951 = vadd.f32 %v918, %v950
        %952 = vdwg.mxu0
        %953 = vmatpush.msra.mxu0 0.0
        %954 = vmatpush.msra.mxu0 0.0
        %955 = vmatpush.msra.mxu0 0.0
        %956 = vmatpush.msra.mxu0 0.0
        %957 = vmatpush.msra.mxu0 0.0
        %958 = vmatpush.msra.mxu0 0.0
        %959 = vmatpush.msra.mxu0 0.0
        %960 = vmatpush.msra.mxu0 0.0
        %961 = vmatpush.msra.mxu0 0.0
        %962 = vmatpush.msra.mxu0 0.0
        %963 = vmatpush.msra.mxu0 0.0
        %964 = vmatpush.msra.mxu0 0.0
        %v965 = vand.u32 %v227, 4294901760
        %966 = vmatpush.msra.mxu0 %v965
        %v967 = vand.u32 %v223, 4294901760
        %968 = vmatpush.msra.mxu0 %v967
        %v969 = vand.u32 %v219, 4294901760
        %970 = vmatpush.msra.mxu0 %v969
        %v971 = vand.u32 %v215, 4294901760
        %972 = vmatpush.msra.mxu0 %v971
        %v973 = vand.u32 %v236, 4294901760
        %974 = vmatmul.f32.gmra.mxu0 %v973
        %v975 = vpop.f32.mrf.mxu0
        %v976 = vadd.f32 %v951, %v975
        %977 = vdwg.mxu0
        %v978 = vmax.f32 %v421, 0.0
        %v979 = vmax.f32 %v606, 0.0
        %v980 = vmax.f32 %v791, 0.0
        %v981 = vmax.f32 %v976, 0.0
        %982 = vst [vmem:[%s208] sm:$0xff] %v978
        %983 = vst [vmem:[%s208 + $0x8] sm:$0xff] %v979
        %984 = vst [vmem:[%s208 + $0x10] sm:$0xff] %v980
        %985 = vst [vmem:[%s208 + $0x18] sm:$0xff] %v981
        %s986 = sand.u32 %s112, 1
        %s987 = scalar_lea.sflag [#allocation4], %s986
        %s988 = sand.u32 %s112, 1
        %s989 = smul.addr %s988, 32
        %s990 = scalar_lea.vmem [#allocation5], %s989
        // Predicated region
        $region37: #{tpu_custom_call.1} parent=31 // pred_check
          %p991 = pneg %p122
        $region38: #{tpu_custom_call.1} parent=31 // pred_check_branch
          %993 = sbr.rel (%p991) target = $region40
        $region39: #{tpu_custom_call.1} parent=31 // pred_region
          %s994 = smul.u32 4, %s25
          %996 = vsyncadd %s987, 0
          %s997 = smul.addr %s24, 4
          %s998 = sadd.s32 %s994, %s997
          %s999 = smul.addr %s998, 8
          %s1000 = scalar_lea.hbm %s3, %s999
          %s1002 = sshll.u32 %s990, 4
          %s1003 = int_to_ptr.vmem [resolvable:$true] %s1002
          %s1004 = sshll.u32 %s1000, 4
          %s1005 = int_to_ptr.hbm [resolvable:$true] %s1004
          %1007 = dma.vmem_to_hbm [thread:$0]  %s1003, 512, %s1005, %s987
        $region40: #{tpu_custom_call.1} parent=31 // pred_fallthru
          _
      $region32: #{tpu_custom_call.1} parent=5 // pred_fallthru
        _
      %p1008 = scmp.le.s32.totalorder 2, %s15
      // Predicated region
      $region41: #{tpu_custom_call.1} parent=5 // pred_check
        %p1009 = pneg %p1008
      $region42: #{tpu_custom_call.1} parent=5 // pred_check_branch
        %1011 = sbr.rel (%p1009) target = $region44
      $region43: #{tpu_custom_call.1} parent=5 // pred_region
        %s1012 = ssub.s32 %s15, 2
        // Predicated region
        $region45: #{tpu_custom_call.1} parent=43 // pred_check
          %p1013 = pneg %p128
        $region46: #{tpu_custom_call.1} parent=43 // pred_check_branch
          %1015 = sbr.rel (%p1013) target = $region48
        $region47: #{tpu_custom_call.1} parent=43 // pred_region
          %s1016 = sand.u32 %s113, 1
          %s1017 = scalar_lea.sflag [#allocation4], %s1016
          %s1018 = sand.u32 %s113, 1
          %s1019 = smul.addr %s1018, 32
          %s1020 = scalar_lea.vmem [#allocation5], %s1019
          %1022 = dma.done %s1017, 512
        $region48: #{tpu_custom_call.1} parent=43 // pred_fallthru
          _
      $region44: #{tpu_custom_call.1} parent=5 // pred_fallthru
        _
    $region6: #{tpu_custom_call.1} parent=1 // loop_footer
      %s19 = sadd.s32 1, %s15
    $region7: #{tpu_custom_call.1} parent=1 // loop_footer_branch
      %14 = sbr.rel target = $region3
    $region8: #{tpu_custom_call.1} parent=1 // loop_exit
      _
    %1023 = vsyncpa [#allocation3], 1
    %s1024 = scalar_lea.sflag [#allocation3], 1
    %1025 = vsyncpa %s1024, 1
    %1026 = vsyncpa [#allocation4], 1
    %s1027 = scalar_lea.sflag [#allocation4], 1
    %1028 = vsyncpa %s1027, 1

</llo_original>
